<compile_context>
chip_gen: v7x
topology: tpu7x:2x2x1
jax: 0.10.0
libtpu: 0.0.40
codegen_flags: <defaults>
</compile_context>

<pallas_src>
import functools
import math

import numpy as np
import jax
import jax.numpy as jnp
from jax.experimental import pallas as pl
from jax.experimental.pallas import tpu as pltpu


# ----------------------------------------------------------------------------
# Host-side constant builders (cached).
# ----------------------------------------------------------------------------
@functools.lru_cache(maxsize=None)
def make_bicubic_matrix(in_size, out_size, scale):
    """Bicubic interpolation matrix matching torch.nn.functional.interpolate(
    mode='bicubic', align_corners=False), a = -0.75, edge-clamped taps."""
    A = -0.75

    def cc1(t):  # |t| <= 1
        return ((A + 2.0) * t - (A + 3.0)) * t * t + 1.0

    def cc2(t):  # 1 < |t| < 2
        return ((A * t - 5.0 * A) * t + 8.0 * A) * t - 4.0 * A

    M = np.zeros((out_size, in_size), dtype=np.float32)
    for i in range(out_size):
        src = (i + 0.5) / scale - 0.5
        f = int(math.floor(src))
        t = src - f
        ws = [cc2(t + 1.0), cc1(t), cc1(1.0 - t), cc2(2.0 - t)]
        for k in range(4):
            idx = min(max(f - 1 + k, 0), in_size - 1)
            M[i, idx] += ws[k]
    return M


@functools.lru_cache(maxsize=None)
def _conv_column_structure(W):
    """S[w_in, kw, w_out] = 1 iff w_in == w_out + kw - 1 (w zero-pad implicit:
    out-of-range taps simply have no entry)."""
    S = np.zeros((W, 3, W), dtype=np.float32)
    for kw in range(3):
        for w_out in range(W):
            w_in = w_out + kw - 1
            if 0 <= w_in < W:
                S[w_in, kw, w_out] = 1.0
    return S


def build_fsrcnn_operands(w1, b1, w2, b2, H, W, scale=2):
    """Per-image (batch-independent) weight matrices in bf16.

    For inference with static weights, call this once and pass the result to
    fsrcnn_change_forward(..., operands=...) to hoist the construction out of
    the per-call path."""
    D = w1.shape[0]
    OH, OW = scale * H, scale * W
    bf = jnp.bfloat16

    w1v = jnp.asarray(w1).reshape(D, 3, 3).astype(jnp.float32)
    w2v = jnp.asarray(w2).reshape(D).astype(jnp.float32)
    b1v = jnp.asarray(b1).reshape(D).astype(jnp.float32)
    b2v = jnp.asarray(b2).reshape(1).astype(jnp.float32)

    # Banded conv-as-matmul blocks (no batch kron):
    #   G_kh[w_in, d*W + w_out] = w1[d, kh, w_in - w_out + 1]
    S = jnp.asarray(_conv_column_structure(W))                     # (W, 3, W)
    gb = jnp.einsum('xkw,dhk->hxdw', S, w1v).reshape(3, W, D * W)
    g0, g1, g2 = (gb[k].astype(bf) for k in range(3))
    b1_big = jnp.repeat(b1v, W).reshape(1, D * W)                  # f32, col = d*W + w

    # 1x1 conv: H2[d*W + w_in, w_out] = w2[d] * [w_in == w_out]
    h2 = (w2v[:, None, None] * jnp.eye(W, dtype=jnp.float32)[None, :, :]
          ).reshape(D * W, W).astype(bf)

    ah = jnp.asarray(make_bicubic_matrix(H, OH, float(scale))).astype(bf)     # (OH, H)
    awt = jnp.asarray(make_bicubic_matrix(W, OW, float(scale))).T.astype(bf)  # (W, OW)
    return g0, g1, g2, b1_big, h2, awt, ah, b2v


# ----------------------------------------------------------------------------
# Kernel. Batch packed on sublanes (rows = n*H + h), all heavy ops are bf16
# MXU matmuls with f32 accumulation; big intermediate (NB*H, D*W) is lane
# dense (D*W = 512 lanes at the toy size).
# ----------------------------------------------------------------------------
def _make_fsrcnn_kernel(H, OH, NB, neg_slope=0.01):
    bf = jnp.bfloat16

    def kernel(x_ref, g0_ref, g1_ref, g2_ref, b1_ref, h2_ref, awt_ref, ah_ref,
               b2_ref, o_ref):
        x = x_ref[...]                                           # (NB*H, W) f32
        NBH, W = x.shape
        zrow = jnp.zeros((1, W), jnp.float32)
        # kh row taps as zero-filled row shifts (no 3x lane replication).
        x_dn = jnp.concatenate([zrow, x[:NBH - 1, :]], axis=0)   # row h <- x[h-1]
        x_up = jnp.concatenate([x[1:, :], zrow], axis=0)         # row h <- x[h+1]
        if NB > 1:
            # Zero the rows that would leak across image boundaries in the
            # sublane-packed batch.
            row = jax.lax.broadcasted_iota(jnp.int32, (NBH, 1), 0) % H
            x_dn = jnp.where(row == 0, jnp.zeros_like(x_dn), x_dn)
            x_up = jnp.where(row == H - 1, jnp.zeros_like(x_up), x_up)

        # Conv2d(1->D, 3x3, pad=1): three accumulated MXU matmuls (banded G).
        f = (jnp.dot(x_dn.astype(bf), g0_ref[...], preferred_element_type=jnp.float32)
             + jnp.dot(x.astype(bf), g1_ref[...], preferred_element_type=jnp.float32)
             + jnp.dot(x_up.astype(bf), g2_ref[...], preferred_element_type=jnp.float32))
        f = f + b1_ref[...]
        act = jnp.where(f > 0, f, neg_slope * f).astype(bf)      # (NB*H, D*W)

        # Conv2d(D->1, 1x1): one MXU matmul.
        mid = jnp.dot(act, h2_ref[...], preferred_element_type=jnp.float32)
        mid = mid + b2_ref[0]
        mid = jnp.where(mid > 0, mid, neg_slope * mid).astype(bf)  # (NB*H, W)

        # Bicubic x2 width upsample.
        t = jnp.dot(mid, awt_ref[...], preferred_element_type=jnp.float32).astype(bf)

        # Bicubic x2 height upsample: per-image A_h @ t_n (NB is static & small,
        # so no block-diagonal kron and no wasted MXU work).
        ah = ah_ref[...]                                         # (OH, H) bf16
        for nb in range(NB):
            o_ref[nb * OH:(nb + 1) * OH, :] = jnp.dot(
                ah, t[nb * H:(nb + 1) * H, :], preferred_element_type=jnp.float32)

    return kernel


# ----------------------------------------------------------------------------
# Wrapper.
# ----------------------------------------------------------------------------
def fsrcnn_change_forward(x, w1, b1, w2, b2, scale=2, batch_block=None,
                          operands=None):
    """x: (N, 1, H, W) f32; w1: (D,1,3,3); b1: (D,); w2: (1,D,1,1); b2: (1,)
    Returns (N, 1, scale*H, scale*W) f32."""
    N, C, H, W = x.shape
    assert C == 1, "module default num_channels=1"
    D = w1.shape[0]
    OH, OW = scale * H, scale * W

    # Batch-block selection: prefer grid >= 2 (v7x dual-TC + pipelining) while
    # growing the sublane-packed M = NB*H, with a row cap to bound VMEM.
    if batch_block is None:
        NB = 1
        for cand in range(N, 0, -1):
            if N % cand:
                continue
            if N >= 2 and N // cand < 2:
                continue
            if cand * H > 512:
                continue
            NB = cand
            break
    else:
        NB = batch_block
    assert N % NB == 0
    num_blocks = N // NB

    if operands is None:
        operands = build_fsrcnn_operands(w1, b1, w2, b2, H, W, scale)
    g0, g1, g2, b1_big, h2, awt, ah, b2v = operands

    # Batch packed along sublanes: (N*H, W), row index = n*H + h.
    xs = x[:, 0].reshape(N * H, W).astype(jnp.float32)

    kernel = _make_fsrcnn_kernel(H, OH, NB)

    flops_per_step = (3 * 2 * NB * H * W * D * W      # 3x3 conv (3 banded matmuls)
                      + 2 * NB * H * D * W * W        # 1x1 conv
                      + 2 * NB * H * W * OW           # width bicubic
                      + NB * 2 * OH * H * OW)         # height bicubic
    weight_bytes = (2 * int(g0.size + g1.size + g2.size + h2.size
                            + awt.size + ah.size) + 4 * int(b1_big.size))
    bytes_accessed = 4 * (xs.size + N * OH * OW) + weight_bytes + 4

    # Explicit VMEM budget (weights counted 2x for the pipeliner's default
    # double buffers; x/out blocks double-buffered across grid steps).
    io_bytes = 4 * (NB * H * W + NB * OH * OW)
    interm_bytes = 4 * NB * H * D * W * 3 + 4 * NB * H * (W + OW) * 4
    vmem_limit_bytes = int(min(48 << 20,
                               max(16 << 20,
                                   2 * (2 * weight_bytes + 2 * io_bytes + interm_bytes))))

    out = pl.pallas_call(
        kernel,
        out_shape=jax.ShapeDtypeStruct((N * OH, OW), jnp.float32),
        grid=(num_blocks,),
        in_specs=[
            pl.BlockSpec((NB * H, W), lambda g: (g, 0)),       # x block (batch on rows)
            pl.BlockSpec((W, D * W), lambda g: (0, 0)),        # G_kh0 (VMEM resident)
            pl.BlockSpec((W, D * W), lambda g: (0, 0)),        # G_kh1
            pl.BlockSpec((W, D * W), lambda g: (0, 0)),        # G_kh2
            pl.BlockSpec((1, D * W), lambda g: (0, 0)),        # b1 (f32)
            pl.BlockSpec((D * W, W), lambda g: (0, 0)),        # 1x1-conv matrix
            pl.BlockSpec((W, OW), lambda g: (0, 0)),           # A_w^T
            pl.BlockSpec((OH, H), lambda g: (0, 0)),           # A_h
            pl.BlockSpec(memory_space=pltpu.MemorySpace.SMEM),  # b2 scalar
        ],
        out_specs=pl.BlockSpec((NB * OH, OW), lambda g: (g, 0)),
        compiler_params=pltpu.CompilerParams(
            dimension_semantics=("parallel",),
            vmem_limit_bytes=vmem_limit_bytes),
        cost_estimate=pl.CostEstimate(flops=int(num_blocks * flops_per_step),
                                      transcendentals=0,
                                      bytes_accessed=int(bytes_accessed)),
    )(xs, g0, g1, g2, b1_big, h2, awt, ah, b2v)

    # Layout plumbing only: (N*OH, OW) row-packed slab -> NCHW.
    return out.reshape(N, OH, OW)[:, None, :, :]


# ----------------------------------------------------------------------------
# Pure-JAX reference (same bicubic matrices, straightforward convs, f32 HIGHEST).
# ----------------------------------------------------------------------------
def _reference_forward(x, w1, b1, w2, b2, scale=2):
    N, C, H, W = x.shape
    hi = jax.lax.Precision.HIGHEST
    y = jax.lax.conv_general_dilated(
        x, w1, window_strides=(1, 1), padding=((1, 1), (1, 1)),
        dimension_numbers=('NCHW', 'OIHW', 'NCHW'), precision=hi)
    y = y + b1.reshape(1, -1, 1, 1)
    y = jnp.where(y > 0, y, 0.01 * y)
    z = jax.lax.conv_general_dilated(
        y, w2, window_strides=(1, 1), padding='VALID',
        dimension_numbers=('NCHW', 'OIHW', 'NCHW'), precision=hi)
    z = z + b2.reshape(1, -1, 1, 1)
    z = jnp.where(z > 0, z, 0.01 * z)
    ah = jnp.asarray(make_bicubic_matrix(H, scale * H, float(scale)))
    aw = jnp.asarray(make_bicubic_matrix(W, scale * W, float(scale)))
    return jnp.einsum('uh,nchw,vw->ncuv', ah, z, aw, precision=hi)


if __name__ == "__main__":
    key = jax.random.PRNGKey(0)
    k1, k2, k3, k4, k5 = jax.random.split(key, 5)

    N, C, H, W, D = 2, 1, 16, 16, 32

    x = jax.random.normal(k1, (N, C, H, W), dtype=jnp.float32)
    # Parameter shapes from the module's __init__:
    #   first_part: Conv2d(1, 32, 3, padding=1) -> weight (32,1,3,3), bias (32,)
    #   mid_part:   Conv2d(32, 1, 1)            -> weight (1,32,1,1), bias (1,)
    w1 = jax.random.normal(k2, (D, C, 3, 3), dtype=jnp.float32) * 0.1
    b1 = jax.random.normal(k3, (D,), dtype=jnp.float32) * 0.1
    w2 = jax.random.normal(k4, (1, D, 1, 1), dtype=jnp.float32) * 0.1
    b2 = jax.random.normal(k5, (1,), dtype=jnp.float32) * 0.1

    out = jax.block_until_ready(fsrcnn_change_forward(x, w1, b1, w2, b2, scale=2))
    assert out.shape == (N, 1, 2 * H, 2 * W), out.shape
    assert out.dtype == jnp.float32

    ref = jax.block_until_ready(_reference_forward(x, w1, b1, w2, b2, scale=2))
    err = float(jnp.max(jnp.abs(out - ref)))
    assert err < 5e-2, f"kernel/reference mismatch, max abs err = {err}"

    print("KERNEL_OK")
</pallas_src>

<mosaic_0001>
module attributes {stable_mosaic.version = 11 : i64} {
  func.func @kernel(%arg0: i32, %arg1: memref<16x16xf32, #tpu.memory_space<vmem>>, %arg2: memref<16x512xbf16, #tpu.memory_space<vmem>>, %arg3: memref<16x512xbf16, #tpu.memory_space<vmem>>, %arg4: memref<16x512xbf16, #tpu.memory_space<vmem>>, %arg5: memref<1x512xf32, #tpu.memory_space<vmem>>, %arg6: memref<512x16xbf16, #tpu.memory_space<vmem>>, %arg7: memref<16x32xbf16, #tpu.memory_space<vmem>>, %arg8: memref<32x16xbf16, #tpu.memory_space<vmem>>, %arg9: memref<1xf32, #tpu.memory_space<smem>>, %arg10: memref<32x32xf32, #tpu.memory_space<vmem>>) attributes {dimension_semantics = [#tpu.dimension_semantics<parallel>], iteration_bounds = array<i64: 2>, scalar_prefetch = 0 : i64, scratch_operands = 0 : i64, tpu.core_type = #tpu.core_type<tc>, window_params = [{transform_indices = @transform_0, window_bounds = array<i64: 16, 16>}, {pipeline_mode = #tpu.pipeline_mode<synchronous>, transform_indices = @transform_1, window_bounds = array<i64: 16, 512>}, {pipeline_mode = #tpu.pipeline_mode<synchronous>, transform_indices = @transform_2, window_bounds = array<i64: 16, 512>}, {pipeline_mode = #tpu.pipeline_mode<synchronous>, transform_indices = @transform_3, window_bounds = array<i64: 16, 512>}, {pipeline_mode = #tpu.pipeline_mode<synchronous>, transform_indices = @transform_4, window_bounds = array<i64: 1, 512>}, {pipeline_mode = #tpu.pipeline_mode<synchronous>, transform_indices = @transform_5, window_bounds = array<i64: 512, 16>}, {pipeline_mode = #tpu.pipeline_mode<synchronous>, transform_indices = @transform_6, window_bounds = array<i64: 16, 32>}, {pipeline_mode = #tpu.pipeline_mode<synchronous>, transform_indices = @transform_7, window_bounds = array<i64: 32, 16>}, {transform_indices = @transform_8, window_bounds = array<i64: 1>}, {transform_indices = @transform_9, window_bounds = array<i64: 32, 32>}]} {
    %c0 = arith.constant 0 : index
    %c0_0 = arith.constant 0 : index
    %0 = vector.load %arg1[%c0, %c0_0] : memref<16x16xf32, #tpu.memory_space<vmem>>, vector<16x16xf32>
    %cst = arith.constant 0.000000e+00 : f32
    %1 = vector.broadcast %cst : f32 to vector<1x16xf32>
    %2 = vector.extract_strided_slice %0 {offsets = [0, 0], sizes = [15, 16], strides = [1, 1]} : vector<16x16xf32> to vector<15x16xf32>
    %3 = tpu.concatenate %1, %2 in 0 : vector<1x16xf32>, vector<15x16xf32> -> vector<16x16xf32>
    %4 = vector.extract_strided_slice %0 {offsets = [1, 0], sizes = [15, 16], strides = [1, 1]} : vector<16x16xf32> to vector<15x16xf32>
    %5 = tpu.concatenate %4, %1 in 0 : vector<15x16xf32>, vector<1x16xf32> -> vector<16x16xf32>
    %6 = arith.truncf %3 : vector<16x16xf32> to vector<16x16xbf16>
    %c0_1 = arith.constant 0 : index
    %c0_2 = arith.constant 0 : index
    %7 = vector.load %arg2[%c0_1, %c0_2] : memref<16x512xbf16, #tpu.memory_space<vmem>>, vector<16x512xbf16>
    %cst_3 = arith.constant dense<0.000000e+00> : vector<16x512xf32>
    %8 = tpu.matmul %6, %7, %cst_3 {dimension_numbers = #tpu.dot_dimension_numbers<[1], [0], [0], [1], [0, 0, 1, 1], [], []>} : vector<16x16xbf16>, vector<16x512xbf16>, vector<16x512xf32> -> vector<16x512xf32>
    %9 = arith.truncf %0 : vector<16x16xf32> to vector<16x16xbf16>
    %c0_4 = arith.constant 0 : index
    %c0_5 = arith.constant 0 : index
    %10 = vector.load %arg3[%c0_4, %c0_5] : memref<16x512xbf16, #tpu.memory_space<vmem>>, vector<16x512xbf16>
    %cst_6 = arith.constant dense<0.000000e+00> : vector<16x512xf32>
    %11 = tpu.matmul %9, %10, %cst_6 {dimension_numbers = #tpu.dot_dimension_numbers<[1], [0], [0], [1], [0, 0, 1, 1], [], []>} : vector<16x16xbf16>, vector<16x512xbf16>, vector<16x512xf32> -> vector<16x512xf32>
    %12 = arith.addf %8, %11 : vector<16x512xf32>
    %13 = arith.truncf %5 : vector<16x16xf32> to vector<16x16xbf16>
    %c0_7 = arith.constant 0 : index
    %c0_8 = arith.constant 0 : index
    %14 = vector.load %arg4[%c0_7, %c0_8] : memref<16x512xbf16, #tpu.memory_space<vmem>>, vector<16x512xbf16>
    %cst_9 = arith.constant dense<0.000000e+00> : vector<16x512xf32>
    %15 = tpu.matmul %13, %14, %cst_9 {dimension_numbers = #tpu.dot_dimension_numbers<[1], [0], [0], [1], [0, 0, 1, 1], [], []>} : vector<16x16xbf16>, vector<16x512xbf16>, vector<16x512xf32> -> vector<16x512xf32>
    %16 = arith.addf %12, %15 : vector<16x512xf32>
    %c0_10 = arith.constant 0 : index
    %c0_11 = arith.constant 0 : index
    %17 = vector.load %arg5[%c0_10, %c0_11] : memref<1x512xf32, #tpu.memory_space<vmem>>, vector<1x512xf32>
    %18 = vector.broadcast %17 : vector<1x512xf32> to vector<16x512xf32>
    %19 = arith.addf %16, %18 : vector<16x512xf32>
    %cst_12 = arith.constant 0.000000e+00 : f32
    %20 = vector.broadcast %cst_12 : f32 to vector<16x512xf32>
    %21 = arith.cmpf ogt, %19, %20 : vector<16x512xf32>
    %cst_13 = arith.constant 0.00999999977 : f32
    %22 = vector.broadcast %cst_13 : f32 to vector<16x512xf32>
    %23 = arith.mulf %22, %19 : vector<16x512xf32>
    %24 = arith.select %21, %19, %23 : vector<16x512xi1>, vector<16x512xf32>
    %25 = arith.truncf %24 : vector<16x512xf32> to vector<16x512xbf16>
    %c0_14 = arith.constant 0 : index
    %c0_15 = arith.constant 0 : index
    %26 = vector.load %arg6[%c0_14, %c0_15] : memref<512x16xbf16, #tpu.memory_space<vmem>>, vector<512x16xbf16>
    %cst_16 = arith.constant dense<0.000000e+00> : vector<16x16xf32>
    %27 = tpu.matmul %25, %26, %cst_16 {dimension_numbers = #tpu.dot_dimension_numbers<[1], [0], [0], [1], [0, 0, 1, 1], [], []>} : vector<16x512xbf16>, vector<512x16xbf16>, vector<16x16xf32> -> vector<16x16xf32>
    %c0_17 = arith.constant 0 : index
    %28 = memref.load %arg9[%c0_17] : memref<1xf32, #tpu.memory_space<smem>>
    %29 = vector.broadcast %28 : f32 to vector<16x16xf32>
    %30 = arith.addf %27, %29 : vector<16x16xf32>
    %cst_18 = arith.constant 0.000000e+00 : f32
    %31 = vector.broadcast %cst_18 : f32 to vector<16x16xf32>
    %32 = arith.cmpf ogt, %30, %31 : vector<16x16xf32>
    %cst_19 = arith.constant 0.00999999977 : f32
    %33 = vector.broadcast %cst_19 : f32 to vector<16x16xf32>
    %34 = arith.mulf %33, %30 : vector<16x16xf32>
    %35 = arith.select %32, %30, %34 : vector<16x16xi1>, vector<16x16xf32>
    %36 = arith.truncf %35 : vector<16x16xf32> to vector<16x16xbf16>
    %c0_20 = arith.constant 0 : index
    %c0_21 = arith.constant 0 : index
    %37 = vector.load %arg7[%c0_20, %c0_21] : memref<16x32xbf16, #tpu.memory_space<vmem>>, vector<16x32xbf16>
    %cst_22 = arith.constant dense<0.000000e+00> : vector<16x32xf32>
    %38 = tpu.matmul %36, %37, %cst_22 {dimension_numbers = #tpu.dot_dimension_numbers<[1], [0], [0], [1], [0, 0, 1, 1], [], []>} : vector<16x16xbf16>, vector<16x32xbf16>, vector<16x32xf32> -> vector<16x32xf32>
    %39 = arith.truncf %38 : vector<16x32xf32> to vector<16x32xbf16>
    %c0_23 = arith.constant 0 : index
    %c0_24 = arith.constant 0 : index
    %40 = vector.load %arg8[%c0_23, %c0_24] : memref<32x16xbf16, #tpu.memory_space<vmem>>, vector<32x16xbf16>
    %cst_25 = arith.constant dense<0.000000e+00> : vector<32x32xf32>
    %41 = tpu.matmul %40, %39, %cst_25 {dimension_numbers = #tpu.dot_dimension_numbers<[1], [0], [0], [1], [0, 0, 1, 1], [], []>} : vector<32x16xbf16>, vector<16x32xbf16>, vector<32x32xf32> -> vector<32x32xf32>
    %c0_26 = arith.constant 0 : index
    %c0_27 = arith.constant 0 : index
    %42 = vector.load %arg10[%c0_26, %c0_27] : memref<32x32xf32, #tpu.memory_space<vmem>>, vector<32x32xf32>
    tpu.vector_store %arg10[%c0_26, %c0_27], %41 {strides = array<i32>} : memref<32x32xf32, #tpu.memory_space<vmem>>, vector<32x32xf32>,
    return
  }
  func.func @transform_0(%arg0: i32) -> (i32, i32) {
    %c0_i32 = arith.constant 0 : i32
    %c0_i32_0 = arith.constant 0 : i32
    return %arg0, %c0_i32 : i32, i32
  }
  func.func @transform_1(%arg0: i32) -> (i32, i32) {
    %c0_i32 = arith.constant 0 : i32
    %c0_i32_0 = arith.constant 0 : i32
    %c0_i32_1 = arith.constant 0 : i32
    return %c0_i32, %c0_i32_0 : i32, i32
  }
  func.func @transform_2(%arg0: i32) -> (i32, i32) {
    %c0_i32 = arith.constant 0 : i32
    %c0_i32_0 = arith.constant 0 : i32
    %c0_i32_1 = arith.constant 0 : i32
    return %c0_i32, %c0_i32_0 : i32, i32
  }
  func.func @transform_3(%arg0: i32) -> (i32, i32) {
    %c0_i32 = arith.constant 0 : i32
    %c0_i32_0 = arith.constant 0 : i32
    %c0_i32_1 = arith.constant 0 : i32
    return %c0_i32, %c0_i32_0 : i32, i32
  }
  func.func @transform_4(%arg0: i32) -> (i32, i32) {
    %c0_i32 = arith.constant 0 : i32
    %c0_i32_0 = arith.constant 0 : i32
    %c0_i32_1 = arith.constant 0 : i32
    return %c0_i32, %c0_i32_0 : i32, i32
  }
  func.func @transform_5(%arg0: i32) -> (i32, i32) {
    %c0_i32 = arith.constant 0 : i32
    %c0_i32_0 = arith.constant 0 : i32
    %c0_i32_1 = arith.constant 0 : i32
    return %c0_i32, %c0_i32_0 : i32, i32
  }
  func.func @transform_6(%arg0: i32) -> (i32, i32) {
    %c0_i32 = arith.constant 0 : i32
    %c0_i32_0 = arith.constant 0 : i32
    %c0_i32_1 = arith.constant 0 : i32
    return %c0_i32, %c0_i32_0 : i32, i32
  }
  func.func @transform_7(%arg0: i32) -> (i32, i32) {
    %c0_i32 = arith.constant 0 : i32
    %c0_i32_0 = arith.constant 0 : i32
    %c0_i32_1 = arith.constant 0 : i32
    return %c0_i32, %c0_i32_0 : i32, i32
  }
  func.func @transform_8(%arg0: i32) -> i32 {
    %c0_i32 = arith.constant 0 : i32
    %c0_i32_0 = arith.constant 0 : i32
    return %c0_i32 : i32
  }
  func.func @transform_9(%arg0: i32) -> (i32, i32) {
    %c0_i32 = arith.constant 0 : i32
    %c0_i32_0 = arith.constant 0 : i32
    return %arg0, %c0_i32 : i32, i32
  }
}

</mosaic_0001>

<llo_original>
// kernel: tpu_custom_call.1
$region0: #{tpu_custom_call.1}
  #allocation0 [shape = 'u32[]', space=smem, size = 0x4, offset = 0x4, fixed_abs, tag = 'smem constant byte address 0x4 - core index']
  #allocation1 [shape = 'u32[144,128]{1,0:T(1,128)}', space=vmem, size = 0x12000, scoped, tag = 'internal scratch']
  #allocation2 [shape = 'f32[1]{0:T(128)S(6)}', space=smem, size = 0x200, scoped, tag = 'scoped memory for tpu_custom_call.1']
  %s0 = inlined_call_operand.vmem [shape: f32[32,16], index: 0, kind: input, shape index: {}]
  %s1 = inlined_call_operand.vmem [shape: bf16[16,512], index: 1, kind: input, shape index: {}]
  %s2 = inlined_call_operand.vmem [shape: bf16[16,512], index: 2, kind: input, shape index: {}]
  %s3 = inlined_call_operand.vmem [shape: bf16[16,512], index: 3, kind: input, shape index: {}]
  %s4 = inlined_call_operand.vmem [shape: f32[1,512], index: 4, kind: input, shape index: {}]
  %s5 = inlined_call_operand.vmem [shape: bf16[512,16], index: 5, kind: input, shape index: {}]
  %s6 = inlined_call_operand.vmem [shape: bf16[16,32], index: 6, kind: input, shape index: {}]
  %s7 = inlined_call_operand.vmem [shape: bf16[32,16], index: 7, kind: input, shape index: {}]
  %s8 = inlined_call_operand.<no memory space> [shape: f32[1], index: 8, kind: input, shape index: {}]
  %s9 = inlined_call_operand.vmem [shape: f32[64,32], index: 9, kind: output, shape index: {}]
  %s10 = sld [smem:[#allocation0]]
  $region69: #{tpu_custom_call.1} parent=0
    _
  %s12 = ssub.s32 1, %s10
  %s13 = scalar_select 0, %s12, %s10
  %14 = sst [smem:[#allocation2]] %s8
  loop: start=0, step=1, limit=4
  $region2: #{tpu_custom_call.1} parent=0 // loop_pre_header
    _
  $region3: #{tpu_custom_call.1} parent=0 // loop_header
    %s16 = sphi 0, %s20
    %p17 = scmp.ge.s32.totalorder %s16, 4
    %s26 = sphi 0, %s28
    %s29 = sphi 0, %s26
    %s30 = sphi 0, %s29
    %s46 = sphi 0, %s30
    %s50 = sphi 0, %s50
    %s52 = sphi 0, %s50
    %s53 = sphi 0, %s52
    %s67 = sphi 0, %s53
    %s71 = sphi 0, %s71
    %s73 = sphi 0, %s71
    %s74 = sphi 0, %s73
    %s88 = sphi 0, %s74
    %s92 = sphi 0, %s92
    %s94 = sphi 0, %s92
    %s95 = sphi 0, %s94
    %s109 = sphi 0, %s95
    %s113 = sphi 0, %s113
    %s115 = sphi 0, %s113
    %s116 = sphi 0, %s115
    %s130 = sphi 0, %s116
    %s134 = sphi 0, %s134
    %s136 = sphi 0, %s134
    %s137 = sphi 0, %s136
    %s151 = sphi 0, %s137
    %s155 = sphi 0, %s155
    %s157 = sphi 0, %s155
    %s158 = sphi 0, %s157
    %s172 = sphi 0, %s158
    %s176 = sphi 0, %s176
    %s178 = sphi 0, %s176
    %s179 = sphi 0, %s178
    %s193 = sphi 0, %s179
    %s197 = sphi 0, %s197
    %s199 = sphi 0, %s197
    %s200 = sphi 0, %s199
    %s214 = sphi 0, %s200
    %s220 = sphi 0, %s222
    %s223 = sphi 0, %s220
    %s224 = sphi 0, %s223
    %s240 = sphi 0, %s224
  $region4: #{tpu_custom_call.1} parent=0 // loop_header_branch
    %19 = sbr.rel (%p17) target = $region8
  $region5: #{tpu_custom_call.1} parent=0 // loop_body
    %s21 = ssub.s32 %s16, 1
    %s22 = ssub.s32 %s16, 2
    %s23 = sadd.s32 %s16, 1
    %s24 = ssub.s32 %s16, %s23
    %p25 = scmp.eq.s32.totalorder %s24, 0
    %s27 = sadd.s32 %s26, 1
    %s28 = scalar_select %p25, %s26, %s27
    %p31 = pneg %p25
    %p32 = scmp.eq.s32.totalorder %s16, 1
    %p33 = por %p31, %p32
    %p34 = scmp.ne.s32.totalorder %s26, %s29
    %p35 = scmp.eq.s32.totalorder %s16, 0
    %p36 = por %p34, %p35
    %p37 = scmp.ne.s32.totalorder %s26, %s29
    %p38 = scmp.eq.s32.totalorder %s21, 1
    %p39 = por %p37, %p38
    %p40 = scmp.ne.s32.totalorder %s29, %s30
    %p41 = scmp.eq.s32.totalorder %s21, 0
    %p42 = por %p40, %p41
    %p43 = scmp.ne.s32.totalorder %s29, %s30
    %p44 = scmp.eq.s32.totalorder %s22, 1
    %p45 = por %p43, %p44
    %p47 = scmp.ne.s32.totalorder %s30, %s46
    %p48 = scmp.eq.s32.totalorder %s22, 0
    %p49 = por %p47, %p48
    %s51 = sadd.s32 %s50, 1
    %p54 = scmp.eq.s32.totalorder %s16, 1
    %p55 = scmp.ne.s32.totalorder %s50, %s52
    %p56 = scmp.eq.s32.totalorder %s16, 0
    %p57 = por %p55, %p56
    %p58 = scmp.ne.s32.totalorder %s50, %s52
    %p59 = scmp.eq.s32.totalorder %s21, 1
    %p60 = por %p58, %p59
    %p61 = scmp.ne.s32.totalorder %s52, %s53
    %p62 = scmp.eq.s32.totalorder %s21, 0
    %p63 = por %p61, %p62
    %p64 = scmp.ne.s32.totalorder %s52, %s53
    %p65 = scmp.eq.s32.totalorder %s22, 1
    %p66 = por %p64, %p65
    %p68 = scmp.ne.s32.totalorder %s53, %s67
    %p69 = scmp.eq.s32.totalorder %s22, 0
    %p70 = por %p68, %p69
    %s72 = sadd.s32 %s71, 1
    %p75 = scmp.eq.s32.totalorder %s16, 1
    %p76 = scmp.ne.s32.totalorder %s71, %s73
    %p77 = scmp.eq.s32.totalorder %s16, 0
    %p78 = por %p76, %p77
    %p79 = scmp.ne.s32.totalorder %s71, %s73
    %p80 = scmp.eq.s32.totalorder %s21, 1
    %p81 = por %p79, %p80
    %p82 = scmp.ne.s32.totalorder %s73, %s74
    %p83 = scmp.eq.s32.totalorder %s21, 0
    %p84 = por %p82, %p83
    %p85 = scmp.ne.s32.totalorder %s73, %s74
    %p86 = scmp.eq.s32.totalorder %s22, 1
    %p87 = por %p85, %p86
    %p89 = scmp.ne.s32.totalorder %s74, %s88
    %p90 = scmp.eq.s32.totalorder %s22, 0
    %p91 = por %p89, %p90
    %s93 = sadd.s32 %s92, 1
    %p96 = scmp.eq.s32.totalorder %s16, 1
    %p97 = scmp.ne.s32.totalorder %s92, %s94
    %p98 = scmp.eq.s32.totalorder %s16, 0
    %p99 = por %p97, %p98
    %p100 = scmp.ne.s32.totalorder %s92, %s94
    %p101 = scmp.eq.s32.totalorder %s21, 1
    %p102 = por %p100, %p101
    %p103 = scmp.ne.s32.totalorder %s94, %s95
    %p104 = scmp.eq.s32.totalorder %s21, 0
    %p105 = por %p103, %p104
    %p106 = scmp.ne.s32.totalorder %s94, %s95
    %p107 = scmp.eq.s32.totalorder %s22, 1
    %p108 = por %p106, %p107
    %p110 = scmp.ne.s32.totalorder %s95, %s109
    %p111 = scmp.eq.s32.totalorder %s22, 0
    %p112 = por %p110, %p111
    %s114 = sadd.s32 %s113, 1
    %p117 = scmp.eq.s32.totalorder %s16, 1
    %p118 = scmp.ne.s32.totalorder %s113, %s115
    %p119 = scmp.eq.s32.totalorder %s16, 0
    %p120 = por %p118, %p119
    %p121 = scmp.ne.s32.totalorder %s113, %s115
    %p122 = scmp.eq.s32.totalorder %s21, 1
    %p123 = por %p121, %p122
    %p124 = scmp.ne.s32.totalorder %s115, %s116
    %p125 = scmp.eq.s32.totalorder %s21, 0
    %p126 = por %p124, %p125
    %p127 = scmp.ne.s32.totalorder %s115, %s116
    %p128 = scmp.eq.s32.totalorder %s22, 1
    %p129 = por %p127, %p128
    %p131 = scmp.ne.s32.totalorder %s116, %s130
    %p132 = scmp.eq.s32.totalorder %s22, 0
    %p133 = por %p131, %p132
    %s135 = sadd.s32 %s134, 1
    %p138 = scmp.eq.s32.totalorder %s16, 1
    %p139 = scmp.ne.s32.totalorder %s134, %s136
    %p140 = scmp.eq.s32.totalorder %s16, 0
    %p141 = por %p139, %p140
    %p142 = scmp.ne.s32.totalorder %s134, %s136
    %p143 = scmp.eq.s32.totalorder %s21, 1
    %p144 = por %p142, %p143
    %p145 = scmp.ne.s32.totalorder %s136, %s137
    %p146 = scmp.eq.s32.totalorder %s21, 0
    %p147 = por %p145, %p146
    %p148 = scmp.ne.s32.totalorder %s136, %s137
    %p149 = scmp.eq.s32.totalorder %s22, 1
    %p150 = por %p148, %p149
    %p152 = scmp.ne.s32.totalorder %s137, %s151
    %p153 = scmp.eq.s32.totalorder %s22, 0
    %p154 = por %p152, %p153
    %s156 = sadd.s32 %s155, 1
    %p159 = scmp.eq.s32.totalorder %s16, 1
    %p160 = scmp.ne.s32.totalorder %s155, %s157
    %p161 = scmp.eq.s32.totalorder %s16, 0
    %p162 = por %p160, %p161
    %p163 = scmp.ne.s32.totalorder %s155, %s157
    %p164 = scmp.eq.s32.totalorder %s21, 1
    %p165 = por %p163, %p164
    %p166 = scmp.ne.s32.totalorder %s157, %s158
    %p167 = scmp.eq.s32.totalorder %s21, 0
    %p168 = por %p166, %p167
    %p169 = scmp.ne.s32.totalorder %s157, %s158
    %p170 = scmp.eq.s32.totalorder %s22, 1
    %p171 = por %p169, %p170
    %p173 = scmp.ne.s32.totalorder %s158, %s172
    %p174 = scmp.eq.s32.totalorder %s22, 0
    %p175 = por %p173, %p174
    %s177 = sadd.s32 %s176, 1
    %p180 = scmp.eq.s32.totalorder %s16, 1
    %p181 = scmp.ne.s32.totalorder %s176, %s178
    %p182 = scmp.eq.s32.totalorder %s16, 0
    %p183 = por %p181, %p182
    %p184 = scmp.ne.s32.totalorder %s176, %s178
    %p185 = scmp.eq.s32.totalorder %s21, 1
    %p186 = por %p184, %p185
    %p187 = scmp.ne.s32.totalorder %s178, %s179
    %p188 = scmp.eq.s32.totalorder %s21, 0
    %p189 = por %p187, %p188
    %p190 = scmp.ne.s32.totalorder %s178, %s179
    %p191 = scmp.eq.s32.totalorder %s22, 1
    %p192 = por %p190, %p191
    %p194 = scmp.ne.s32.totalorder %s179, %s193
    %p195 = scmp.eq.s32.totalorder %s22, 0
    %p196 = por %p194, %p195
    %s198 = sadd.s32 %s197, 1
    %p201 = scmp.eq.s32.totalorder %s16, 1
    %p202 = scmp.ne.s32.totalorder %s197, %s199
    %p203 = scmp.eq.s32.totalorder %s16, 0
    %p204 = por %p202, %p203
    %p205 = scmp.ne.s32.totalorder %s197, %s199
    %p206 = scmp.eq.s32.totalorder %s21, 1
    %p207 = por %p205, %p206
    %p208 = scmp.ne.s32.totalorder %s199, %s200
    %p209 = scmp.eq.s32.totalorder %s21, 0
    %p210 = por %p208, %p209
    %p211 = scmp.ne.s32.totalorder %s199, %s200
    %p212 = scmp.eq.s32.totalorder %s22, 1
    %p213 = por %p211, %p212
    %p215 = scmp.ne.s32.totalorder %s200, %s214
    %p216 = scmp.eq.s32.totalorder %s22, 0
    %p217 = por %p215, %p216
    %s218 = ssub.s32 %s16, %s23
    %p219 = scmp.eq.s32.totalorder %s218, 0
    %s221 = sadd.s32 %s220, 1
    %s222 = scalar_select %p219, %s220, %s221
    %p225 = pneg %p219
    %p226 = scmp.eq.s32.totalorder %s16, 1
    %p227 = por %p225, %p226
    %p228 = scmp.ne.s32.totalorder %s220, %s223
    %p229 = scmp.eq.s32.totalorder %s16, 0
    %p230 = por %p228, %p229
    %p231 = scmp.ne.s32.totalorder %s220, %s223
    %p232 = scmp.eq.s32.totalorder %s21, 1
    %p233 = por %p231, %p232
    %p234 = scmp.ne.s32.totalorder %s223, %s224
    %p235 = scmp.eq.s32.totalorder %s21, 0
    %p236 = por %p234, %p235
    %p237 = scmp.ne.s32.totalorder %s223, %s224
    %p238 = scmp.eq.s32.totalorder %s22, 1
    %p239 = por %p237, %p238
    %p241 = scmp.ne.s32.totalorder %s224, %s240
    %p242 = scmp.eq.s32.totalorder %s22, 0
    %p243 = por %p241, %p242
    %p244 = scmp.le.s32.totalorder 1, %s16
    %p245 = scmp.lt.s32.totalorder %s16, 3
    %p246 = pnand %p244, %p245
    %p247 = pneg %p246
    // Predicated region
    $region9: #{tpu_custom_call.1} parent=5 // pred_check
      _
    $region10: #{tpu_custom_call.1} parent=5 // pred_check_branch
      %249 = sbr.rel (%p246) target = $region12
    $region11: #{tpu_custom_call.1} parent=5 // pred_region
      %s250 = ssub.s32 %s16, 1
      // Predicated region
      $region13: #{tpu_custom_call.1} parent=11 // pred_check
        %p251 = pneg %p63
      $region14: #{tpu_custom_call.1} parent=11 // pred_check_branch
        %253 = sbr.rel (%p251) target = $region16
      $region15: #{tpu_custom_call.1} parent=11 // pred_region
        _
      $region16: #{tpu_custom_call.1} parent=11 // pred_fallthru
        _
      // Predicated region
      $region17: #{tpu_custom_call.1} parent=11 // pred_check
        %p254 = pneg %p84
      $region18: #{tpu_custom_call.1} parent=11 // pred_check_branch
        %256 = sbr.rel (%p254) target = $region20
      $region19: #{tpu_custom_call.1} parent=11 // pred_region
        _
      $region20: #{tpu_custom_call.1} parent=11 // pred_fallthru
        _
      // Predicated region
      $region21: #{tpu_custom_call.1} parent=11 // pred_check
        %p257 = pneg %p105
      $region22: #{tpu_custom_call.1} parent=11 // pred_check_branch
        %259 = sbr.rel (%p257) target = $region24
      $region23: #{tpu_custom_call.1} parent=11 // pred_region
        _
      $region24: #{tpu_custom_call.1} parent=11 // pred_fallthru
        _
      // Predicated region
      $region25: #{tpu_custom_call.1} parent=11 // pred_check
        %p260 = pneg %p126
      $region26: #{tpu_custom_call.1} parent=11 // pred_check_branch
        %262 = sbr.rel (%p260) target = $region28
      $region27: #{tpu_custom_call.1} parent=11 // pred_region
        _
      $region28: #{tpu_custom_call.1} parent=11 // pred_fallthru
        _
      // Predicated region
      $region29: #{tpu_custom_call.1} parent=11 // pred_check
        %p263 = pneg %p147
      $region30: #{tpu_custom_call.1} parent=11 // pred_check_branch
        %265 = sbr.rel (%p263) target = $region32
      $region31: #{tpu_custom_call.1} parent=11 // pred_region
        _
      $region32: #{tpu_custom_call.1} parent=11 // pred_fallthru
        _
      // Predicated region
      $region33: #{tpu_custom_call.1} parent=11 // pred_check
        %p266 = pneg %p168
      $region34: #{tpu_custom_call.1} parent=11 // pred_check_branch
        %268 = sbr.rel (%p266) target = $region36
      $region35: #{tpu_custom_call.1} parent=11 // pred_region
        _
      $region36: #{tpu_custom_call.1} parent=11 // pred_fallthru
        _
      // Predicated region
      $region37: #{tpu_custom_call.1} parent=11 // pred_check
        %p269 = pneg %p189
      $region38: #{tpu_custom_call.1} parent=11 // pred_check_branch
        %271 = sbr.rel (%p269) target = $region40
      $region39: #{tpu_custom_call.1} parent=11 // pred_region
        _
      $region40: #{tpu_custom_call.1} parent=11 // pred_fallthru
        _
      // Predicated region
      $region41: #{tpu_custom_call.1} parent=11 // pred_check
        %p272 = pneg %p210
      $region42: #{tpu_custom_call.1} parent=11 // pred_check_branch
        %274 = sbr.rel (%p272) target = $region44
      $region43: #{tpu_custom_call.1} parent=11 // pred_region
        _
      $region44: #{tpu_custom_call.1} parent=11 // pred_fallthru
        _
    $region12: #{tpu_custom_call.1} parent=5 // pred_fallthru
      _
    %p275 = scmp.lt.s32.totalorder %s16, 2
    // Predicated region
    $region45: #{tpu_custom_call.1} parent=5 // pred_check
      %p276 = pneg %p275
    $region46: #{tpu_custom_call.1} parent=5 // pred_check_branch
      %278 = sbr.rel (%p276) target = $region48
    $region47: #{tpu_custom_call.1} parent=5 // pred_region
      // Predicated region
      $region49: #{tpu_custom_call.1} parent=47 // pred_check
        %p279 = pneg %p36
      $region50: #{tpu_custom_call.1} parent=47 // pred_check_branch
        %281 = sbr.rel (%p279) target = $region52
      $region51: #{tpu_custom_call.1} parent=47 // pred_region
        %s282 = smul.u32 2, %s16
        %p283 = scmp.lt.s32.totalorder %s282, 3
        %s284 = scalar_select %p283, %s282, 3
        %s285 = smul.addr %s284, 8
        %s286 = scalar_lea.vmem %s0, %s285
        %s287 = smul.u32 2, %s16
      $region52: #{tpu_custom_call.1} parent=47 // pred_fallthru
        _
    $region48: #{tpu_custom_call.1} parent=5 // pred_fallthru
      _
    %p288 = scmp.le.s32.totalorder 1, %s16
    %p289 = scmp.lt.s32.totalorder %s16, 3
    %p290 = pnand %p288, %p289
    %p291 = pneg %p290
    // Predicated region
    $region53: #{tpu_custom_call.1} parent=5 // pred_check
      _
    $region54: #{tpu_custom_call.1} parent=5 // pred_check_branch
      %293 = sbr.rel (%p290) target = $region56
    $region55: #{tpu_custom_call.1} parent=5 // pred_region
      %s294 = ssub.s32 %s16, 1
      %s295 = smul.u32 2, %s21
      %p296 = scmp.lt.s32.totalorder %s295, 3
      %s297 = scalar_select %p296, %s295, 3
      %s298 = smul.addr %s297, 8
      %s299 = scalar_lea.vmem %s0, %s298
      %p300 = pneg %p42
      %p301 = pneg %p39
      %p302 = pneg %p63
      %p303 = pneg %p60
      %p304 = pneg %p84
      %p305 = pneg %p81
      %p306 = pneg %p105
      %p307 = pneg %p102
      %p308 = pneg %p126
      %p309 = pneg %p123
      %p310 = pneg %p147
      %p311 = pneg %p144
      %p312 = pneg %p168
      %p313 = pneg %p165
      %p314 = pneg %p189
      %p315 = pneg %p186
      %p316 = pneg %p210
      %p317 = pneg %p207
      %p318 = pneg %p236
      %p319 = pneg %p233
      %s320 = smul.u32 4, %s21
      %p321 = scmp.lt.s32.totalorder %s320, 7
      %s322 = scalar_select %p321, %s320, 7
      %s323 = smul.addr %s322, 8
      %s324 = scalar_lea.vmem %s9, %s323
      %s325 = smul.u32 2, %s21
      %p326 = scmp.lt.s32.totalorder %s325, 3
      %s327 = scalar_select %p326, %s325, 3
      %s328 = smul.addr %s327, 8
      %s329 = scalar_lea.vmem %s0, %s328
      %s330 = smul.u32 2, %s21
      %s331 = smul.u32 4, %s21
      %p332 = scmp.lt.s32.totalorder %s331, 7
      %s333 = scalar_select %p332, %s331, 7
      %s334 = smul.addr %s333, 8
      %s335 = scalar_lea.vmem %s9, %s334
      %s336 = smul.u32 4, %s21
      %v338 = vld [vmem:[%s329] sm:$0xff]
      %v339 = vld [vmem:[%s329 + $0x8] sm:$0xff]
      %vm342 = vcmask 1040384
      %v343 = vrot.slane %v338, 7
      %v344 = vrot.slane %v339, 7
      %v345 = vsel %vm342, %v343, %v344
      %v348 = vsel %vm342, 0.0, %v343
      %vm349 = vcmask 1046528
      %v350 = vrot.slane %v338, 1
      %v351 = vrot.slane %v339, 1
      %v352 = vsel %vm349, %v350, %v351
      %v355 = vsel %vm349, %v351, 0.0
      %v356 = vpack.c.bf16 %v345, %v348
      %v357 = vld [vmem:[%s1] sm:$0xff]
      %v358 = vld [vmem:[%s1 + $0x8] sm:$0xff]
      %v359 = vld [vmem:[%s1 + $0x10] sm:$0xff]
      %v360 = vld [vmem:[%s1 + $0x18] sm:$0xff]
      %v361 = vpack.c.bf16 %v339, %v338
      %v362 = vld [vmem:[%s2] sm:$0xff]
      %v363 = vld [vmem:[%s2 + $0x8] sm:$0xff]
      %v364 = vld [vmem:[%s2 + $0x10] sm:$0xff]
      %v365 = vld [vmem:[%s2 + $0x18] sm:$0xff]
      %v370 = vunpack.c.l.b16 %v362
      %v371 = vunpack.c.h.b16 %v362
      %v372 = vunpack.c.l.b16 %v363
      %v373 = vunpack.c.h.b16 %v363
      %v374 = vunpack.c.l.b16 %v364
      %v375 = vunpack.c.h.b16 %v364
      %v376 = vunpack.c.l.b16 %v365
      %v377 = vunpack.c.h.b16 %v365
      %v378 = vpack.c.b16 %v374, %v370
      %v379 = vpack.c.b16 %v375, %v371
      %v380 = vpack.c.b16 %v376, %v372
      %v381 = vpack.c.b16 %v377, %v373
      %vm386 = vcmask 130048
      %v388 = vsel %vm386, %v361, 0
      %390 = vmatprep.subr.bf16.mxu0 %v379
      %391 = vmatpush1.bf16.msra.mxu0 %v378
      %392 = vmatprep.subr.bf16.mxu0 0
      %393 = vmatpush1.bf16.msra.mxu0 0
      %394 = vmatprep.subr.bf16.mxu0 0
      %395 = vmatpush1.bf16.msra.mxu0 0
      %396 = vmatprep.subr.bf16.mxu0 0
      %397 = vmatpush1.bf16.msra.mxu0 0
      %398 = vmatprep.subr.bf16.mxu0 0
      %399 = vmatpush1.bf16.msra.mxu0 0
      %400 = vmatprep.subr.bf16.mxu0 0
      %401 = vmatpush1.bf16.msra.mxu0 0
      %402 = vmatprep.subr.bf16.mxu0 0
      %403 = vmatpush1.bf16.msra.mxu0 0
      %404 = vmatprep.subr.bf16.mxu0 0
      %405 = vmatpush1.bf16.msra.mxu0 0
      %406 = vmatprep.subr.bf16.mxu0 0
      %407 = vmatpush1.bf16.msra.mxu0 0
      %408 = vmatprep.subr.bf16.mxu0 0
      %409 = vmatpush1.bf16.msra.mxu0 0
      %410 = vmatprep.subr.bf16.mxu0 0
      %411 = vmatpush1.bf16.msra.mxu0 0
      %412 = vmatprep.subr.bf16.mxu0 0
      %413 = vmatpush1.bf16.msra.mxu0 0
      %414 = vmatprep.subr.bf16.mxu0 0
      %415 = vmatpush1.bf16.msra.mxu0 0
      %416 = vmatprep.subr.bf16.mxu0 0
      %417 = vmatpush1.bf16.msra.mxu0 0
      %418 = vmatprep.subr.bf16.mxu0 0
      %419 = vmatpush1.bf16.msra.mxu0 0
      %420 = vmatprep.subr.bf16.mxu0 0
      %421 = vmatpush1.bf16.msra.mxu0 0
      %422 = vmatprep.mubr.bf16.mxu0 0
      %423 = vmatmul.mubr.bf16.gmra.mrb[0].mxu0 %v388
      %v424 = vpop.f32.mrb[0].mxu0
      %v425 = vadd.f32 0.0, %v424
      %v426 = vpop.f32.mrb[0].mxu0
      %v427 = vadd.f32 0.0, %v426
      %v428 = vpop.f32.mrb[0].mxu0
      %v429 = vadd.f32 0.0, %v428
      %v430 = vpop.f32.mrb[0].mxu0
      %v431 = vadd.f32 0.0, %v430
      %432 = vdwg.mxu0
      %433 = vmatprep.subr.bf16.mxu0 %v381
      %434 = vmatpush1.bf16.msra.mxu0 %v380
      %435 = vmatprep.subr.bf16.mxu0 0
      %436 = vmatpush1.bf16.msra.mxu0 0
      %437 = vmatprep.subr.bf16.mxu0 0
      %438 = vmatpush1.bf16.msra.mxu0 0
      %439 = vmatprep.subr.bf16.mxu0 0
      %440 = vmatpush1.bf16.msra.mxu0 0
      %441 = vmatprep.subr.bf16.mxu0 0
      %442 = vmatpush1.bf16.msra.mxu0 0
      %443 = vmatprep.subr.bf16.mxu0 0
      %444 = vmatpush1.bf16.msra.mxu0 0
      %445 = vmatprep.subr.bf16.mxu0 0
      %446 = vmatpush1.bf16.msra.mxu0 0
      %447 = vmatprep.subr.bf16.mxu0 0
      %448 = vmatpush1.bf16.msra.mxu0 0
      %449 = vmatprep.subr.bf16.mxu0 0
      %450 = vmatpush1.bf16.msra.mxu0 0
      %451 = vmatprep.subr.bf16.mxu0 0
      %452 = vmatpush1.bf16.msra.mxu0 0
      %453 = vmatprep.subr.bf16.mxu0 0
      %454 = vmatpush1.bf16.msra.mxu0 0
      %455 = vmatprep.subr.bf16.mxu0 0
      %456 = vmatpush1.bf16.msra.mxu0 0
      %457 = vmatprep.subr.bf16.mxu0 0
      %458 = vmatpush1.bf16.msra.mxu0 0
      %459 = vmatprep.subr.bf16.mxu0 0
      %460 = vmatpush1.bf16.msra.mxu0 0
      %461 = vmatprep.subr.bf16.mxu0 0
      %462 = vmatpush1.bf16.msra.mxu0 0
      %463 = vmatprep.subr.bf16.mxu0 0
      %464 = vmatpush1.bf16.msra.mxu0 0
      %465 = vmatprep.mubr.bf16.mxu0 0
      %466 = vmatmul.mubr.bf16.gmra.mrb[0].mxu0 %v388
      %v467 = vpop.f32.mrb[0].mxu0
      %v468 = vadd.f32 0.0, %v467
      %v469 = vpop.f32.mrb[0].mxu0
      %v470 = vadd.f32 0.0, %v469
      %v471 = vpop.f32.mrb[0].mxu0
      %v472 = vadd.f32 0.0, %v471
      %v473 = vpop.f32.mrb[0].mxu0
      %v474 = vadd.f32 0.0, %v473
      %475 = vdwg.mxu0
      %v480 = vunpack.c.l.b16 %v357
      %v481 = vunpack.c.h.b16 %v357
      %v482 = vunpack.c.l.b16 %v358
      %v483 = vunpack.c.h.b16 %v358
      %v484 = vunpack.c.l.b16 %v359
      %v485 = vunpack.c.h.b16 %v359
      %v486 = vunpack.c.l.b16 %v360
      %v487 = vunpack.c.h.b16 %v360
      %v488 = vpack.c.b16 %v484, %v480
      %v489 = vpack.c.b16 %v485, %v481
      %v490 = vpack.c.b16 %v486, %v482
      %v491 = vpack.c.b16 %v487, %v483
      %v497 = vsel %vm386, %v356, 0
      %499 = vmatprep.subr.bf16.mxu0 %v489
      %500 = vmatpush1.bf16.msra.mxu0 %v488
      %501 = vmatprep.subr.bf16.mxu0 0
      %502 = vmatpush1.bf16.msra.mxu0 0
      %503 = vmatprep.subr.bf16.mxu0 0
      %504 = vmatpush1.bf16.msra.mxu0 0
      %505 = vmatprep.subr.bf16.mxu0 0
      %506 = vmatpush1.bf16.msra.mxu0 0
      %507 = vmatprep.subr.bf16.mxu0 0
      %508 = vmatpush1.bf16.msra.mxu0 0
      %509 = vmatprep.subr.bf16.mxu0 0
      %510 = vmatpush1.bf16.msra.mxu0 0
      %511 = vmatprep.subr.bf16.mxu0 0
      %512 = vmatpush1.bf16.msra.mxu0 0
      %513 = vmatprep.subr.bf16.mxu0 0
      %514 = vmatpush1.bf16.msra.mxu0 0
      %515 = vmatprep.subr.bf16.mxu0 0
      %516 = vmatpush1.bf16.msra.mxu0 0
      %517 = vmatprep.subr.bf16.mxu0 0
      %518 = vmatpush1.bf16.msra.mxu0 0
      %519 = vmatprep.subr.bf16.mxu0 0
      %520 = vmatpush1.bf16.msra.mxu0 0
      %521 = vmatprep.subr.bf16.mxu0 0
      %522 = vmatpush1.bf16.msra.mxu0 0
      %523 = vmatprep.subr.bf16.mxu0 0
      %524 = vmatpush1.bf16.msra.mxu0 0
      %525 = vmatprep.subr.bf16.mxu0 0
      %526 = vmatpush1.bf16.msra.mxu0 0
      %527 = vmatprep.subr.bf16.mxu0 0
      %528 = vmatpush1.bf16.msra.mxu0 0
      %529 = vmatprep.subr.bf16.mxu0 0
      %530 = vmatpush1.bf16.msra.mxu0 0
      %531 = vmatprep.mubr.bf16.mxu0 0
      %532 = vmatmul.mubr.bf16.gmra.mrb[0].mxu0 %v497
      %v533 = vpop.f32.mrb[0].mxu0
      %v534 = vadd.f32 %v425, %v533
      %v535 = vpop.f32.mrb[0].mxu0
      %v536 = vadd.f32 %v427, %v535
      %v537 = vpop.f32.mrb[0].mxu0
      %v538 = vadd.f32 %v429, %v537
      %v539 = vpop.f32.mrb[0].mxu0
      %v540 = vadd.f32 %v431, %v539
      %541 = vdwg.mxu0
      %542 = vmatprep.subr.bf16.mxu0 %v491
      %543 = vmatpush1.bf16.msra.mxu0 %v490
      %544 = vmatprep.subr.bf16.mxu0 0
      %545 = vmatpush1.bf16.msra.mxu0 0
      %546 = vmatprep.subr.bf16.mxu0 0
      %547 = vmatpush1.bf16.msra.mxu0 0
      %548 = vmatprep.subr.bf16.mxu0 0
      %549 = vmatpush1.bf16.msra.mxu0 0
      %550 = vmatprep.subr.bf16.mxu0 0
      %551 = vmatpush1.bf16.msra.mxu0 0
      %552 = vmatprep.subr.bf16.mxu0 0
      %553 = vmatpush1.bf16.msra.mxu0 0
      %554 = vmatprep.subr.bf16.mxu0 0
      %555 = vmatpush1.bf16.msra.mxu0 0
      %556 = vmatprep.subr.bf16.mxu0 0
      %557 = vmatpush1.bf16.msra.mxu0 0
      %558 = vmatprep.subr.bf16.mxu0 0
      %559 = vmatpush1.bf16.msra.mxu0 0
      %560 = vmatprep.subr.bf16.mxu0 0
      %561 = vmatpush1.bf16.msra.mxu0 0
      %562 = vmatprep.subr.bf16.mxu0 0
      %563 = vmatpush1.bf16.msra.mxu0 0
      %564 = vmatprep.subr.bf16.mxu0 0
      %565 = vmatpush1.bf16.msra.mxu0 0
      %566 = vmatprep.subr.bf16.mxu0 0
      %567 = vmatpush1.bf16.msra.mxu0 0
      %568 = vmatprep.subr.bf16.mxu0 0
      %569 = vmatpush1.bf16.msra.mxu0 0
      %570 = vmatprep.subr.bf16.mxu0 0
      %571 = vmatpush1.bf16.msra.mxu0 0
      %572 = vmatprep.subr.bf16.mxu0 0
      %573 = vmatpush1.bf16.msra.mxu0 0
      %574 = vmatprep.mubr.bf16.mxu0 0
      %575 = vmatmul.mubr.bf16.gmra.mrb[0].mxu0 %v497
      %v576 = vpop.f32.mrb[0].mxu0
      %v577 = vadd.f32 %v468, %v576
      %v578 = vpop.f32.mrb[0].mxu0
      %v579 = vadd.f32 %v470, %v578
      %v580 = vpop.f32.mrb[0].mxu0
      %v581 = vadd.f32 %v472, %v580
      %v582 = vpop.f32.mrb[0].mxu0
      %v583 = vadd.f32 %v474, %v582
      %584 = vdwg.mxu0
      %v585 = vpack.c.bf16 %v355, %v352
      %v586 = vld [vmem:[%s3] sm:$0xff]
      %v587 = vld [vmem:[%s3 + $0x8] sm:$0xff]
      %v588 = vld [vmem:[%s3 + $0x10] sm:$0xff]
      %v589 = vld [vmem:[%s3 + $0x18] sm:$0xff]
      %v594 = vunpack.c.l.b16 %v586
      %v595 = vunpack.c.h.b16 %v586
      %v596 = vunpack.c.l.b16 %v587
      %v597 = vunpack.c.h.b16 %v587
      %v598 = vunpack.c.l.b16 %v588
      %v599 = vunpack.c.h.b16 %v588
      %v600 = vunpack.c.l.b16 %v589
      %v601 = vunpack.c.h.b16 %v589
      %v602 = vpack.c.b16 %v598, %v594
      %v603 = vpack.c.b16 %v599, %v595
      %v604 = vpack.c.b16 %v600, %v596
      %v605 = vpack.c.b16 %v601, %v597
      %v611 = vsel %vm386, %v585, 0
      %613 = vmatprep.subr.bf16.mxu0 %v603
      %614 = vmatpush1.bf16.msra.mxu0 %v602
      %615 = vmatprep.subr.bf16.mxu0 0
      %616 = vmatpush1.bf16.msra.mxu0 0
      %617 = vmatprep.subr.bf16.mxu0 0
      %618 = vmatpush1.bf16.msra.mxu0 0
      %619 = vmatprep.subr.bf16.mxu0 0
      %620 = vmatpush1.bf16.msra.mxu0 0
      %621 = vmatprep.subr.bf16.mxu0 0
      %622 = vmatpush1.bf16.msra.mxu0 0
      %623 = vmatprep.subr.bf16.mxu0 0
      %624 = vmatpush1.bf16.msra.mxu0 0
      %625 = vmatprep.subr.bf16.mxu0 0
      %626 = vmatpush1.bf16.msra.mxu0 0
      %627 = vmatprep.subr.bf16.mxu0 0
      %628 = vmatpush1.bf16.msra.mxu0 0
      %629 = vmatprep.subr.bf16.mxu0 0
      %630 = vmatpush1.bf16.msra.mxu0 0
      %631 = vmatprep.subr.bf16.mxu0 0
      %632 = vmatpush1.bf16.msra.mxu0 0
      %633 = vmatprep.subr.bf16.mxu0 0
      %634 = vmatpush1.bf16.msra.mxu0 0
      %635 = vmatprep.subr.bf16.mxu0 0
      %636 = vmatpush1.bf16.msra.mxu0 0
      %637 = vmatprep.subr.bf16.mxu0 0
      %638 = vmatpush1.bf16.msra.mxu0 0
      %639 = vmatprep.subr.bf16.mxu0 0
      %640 = vmatpush1.bf16.msra.mxu0 0
      %641 = vmatprep.subr.bf16.mxu0 0
      %642 = vmatpush1.bf16.msra.mxu0 0
      %643 = vmatprep.subr.bf16.mxu0 0
      %644 = vmatpush1.bf16.msra.mxu0 0
      %645 = vmatprep.mubr.bf16.mxu0 0
      %646 = vmatmul.mubr.bf16.gmra.mrb[0].mxu0 %v611
      %v647 = vpop.f32.mrb[0].mxu0
      %v648 = vadd.f32 0.0, %v647
      %v649 = vpop.f32.mrb[0].mxu0
      %v650 = vadd.f32 0.0, %v649
      %v651 = vpop.f32.mrb[0].mxu0
      %v652 = vadd.f32 0.0, %v651
      %v653 = vpop.f32.mrb[0].mxu0
      %v654 = vadd.f32 0.0, %v653
      %655 = vdwg.mxu0
      %656 = vmatprep.subr.bf16.mxu0 %v605
      %657 = vmatpush1.bf16.msra.mxu0 %v604
      %658 = vmatprep.subr.bf16.mxu0 0
      %659 = vmatpush1.bf16.msra.mxu0 0
      %660 = vmatprep.subr.bf16.mxu0 0
      %661 = vmatpush1.bf16.msra.mxu0 0
      %662 = vmatprep.subr.bf16.mxu0 0
      %663 = vmatpush1.bf16.msra.mxu0 0
      %664 = vmatprep.subr.bf16.mxu0 0
      %665 = vmatpush1.bf16.msra.mxu0 0
      %666 = vmatprep.subr.bf16.mxu0 0
      %667 = vmatpush1.bf16.msra.mxu0 0
      %668 = vmatprep.subr.bf16.mxu0 0
      %669 = vmatpush1.bf16.msra.mxu0 0
      %670 = vmatprep.subr.bf16.mxu0 0
      %671 = vmatpush1.bf16.msra.mxu0 0
      %672 = vmatprep.subr.bf16.mxu0 0
      %673 = vmatpush1.bf16.msra.mxu0 0
      %674 = vmatprep.subr.bf16.mxu0 0
      %675 = vmatpush1.bf16.msra.mxu0 0
      %676 = vmatprep.subr.bf16.mxu0 0
      %677 = vmatpush1.bf16.msra.mxu0 0
      %678 = vmatprep.subr.bf16.mxu0 0
      %679 = vmatpush1.bf16.msra.mxu0 0
      %680 = vmatprep.subr.bf16.mxu0 0
      %681 = vmatpush1.bf16.msra.mxu0 0
      %682 = vmatprep.subr.bf16.mxu0 0
      %683 = vmatpush1.bf16.msra.mxu0 0
      %684 = vmatprep.subr.bf16.mxu0 0
      %685 = vmatpush1.bf16.msra.mxu0 0
      %686 = vmatprep.subr.bf16.mxu0 0
      %687 = vmatpush1.bf16.msra.mxu0 0
      %688 = vmatprep.mubr.bf16.mxu0 0
      %689 = vmatmul.mubr.bf16.gmra.mrb[0].mxu0 %v611
      %v690 = vpop.f32.mrb[0].mxu0
      %v691 = vadd.f32 0.0, %v690
      %v692 = vpop.f32.mrb[0].mxu0
      %v693 = vadd.f32 0.0, %v692
      %v694 = vpop.f32.mrb[0].mxu0
      %v695 = vadd.f32 0.0, %v694
      %v696 = vpop.f32.mrb[0].mxu0
      %v697 = vadd.f32 0.0, %v696
      %698 = vdwg.mxu0
      %v699 = vadd.f32 %v534, %v648
      %v700 = vadd.f32 %v536, %v650
      %v701 = vadd.f32 %v577, %v691
      %v702 = vadd.f32 %v579, %v693
      %v703 = vadd.f32 %v538, %v652
      %v704 = vadd.f32 %v540, %v654
      %v705 = vadd.f32 %v581, %v695
      %v706 = vadd.f32 %v583, %v697
      %v707 = vld [vmem:[%s4] sm:$0xf]
      %v709 = vlaneseq
      %v710 = vshrl.u32 %v709, 7
      %v711 = vsub.s32 0, %v710
      %v712 = vrot.slane %v707, %v711
      %v713 = vlaneseq
      %v714 = vshrl.u32 %v713, 7
      %v715 = vsub.s32 1, %v714
      %v716 = vrot.slane %v707, %v715
      %v717 = vlaneseq
      %v718 = vshrl.u32 %v717, 7
      %v719 = vsub.s32 2, %v718
      %v720 = vrot.slane %v707, %v719
      %v721 = vlaneseq
      %v722 = vshrl.u32 %v721, 7
      %v723 = vsub.s32 3, %v722
      %v724 = vrot.slane %v707, %v723
      %v729 = vadd.f32 %v699, %v712
      %v730 = vadd.f32 %v700, %v716
      %v731 = vadd.f32 %v701, %v720
      %v732 = vadd.f32 %v702, %v724
      %v733 = vadd.f32 %v703, %v712
      %v734 = vadd.f32 %v704, %v716
      %v735 = vadd.f32 %v705, %v720
      %v736 = vadd.f32 %v706, %v724
      %vm737 = vcmp.gt.f32.partialorder %v729, 0.0
      %vm738 = vcmp.gt.f32.partialorder %v730, 0.0
      %vm739 = vcmp.gt.f32.partialorder %v731, 0.0
      %vm740 = vcmp.gt.f32.partialorder %v732, 0.0
      %vm741 = vcmp.gt.f32.partialorder %v733, 0.0
      %vm742 = vcmp.gt.f32.partialorder %v734, 0.0
      %vm743 = vcmp.gt.f32.partialorder %v735, 0.0
      %vm744 = vcmp.gt.f32.partialorder %v736, 0.0
      %v745 = vmul.f32 %v729, 0.01
      %v746 = vmul.f32 %v730, 0.01
      %v747 = vmul.f32 %v731, 0.01
      %v748 = vmul.f32 %v732, 0.01
      %v749 = vmul.f32 %v733, 0.01
      %v750 = vmul.f32 %v734, 0.01
      %v751 = vmul.f32 %v735, 0.01
      %v752 = vmul.f32 %v736, 0.01
      %v753 = vsel %vm737, %v729, %v745
      %v754 = vsel %vm738, %v730, %v746
      %v755 = vsel %vm739, %v731, %v747
      %v756 = vsel %vm740, %v732, %v748
      %v757 = vsel %vm741, %v733, %v749
      %v758 = vsel %vm742, %v734, %v750
      %v759 = vsel %vm743, %v735, %v751
      %v760 = vsel %vm744, %v736, %v752
      %v761 = vpack.c.bf16 %v757, %v753
      %v762 = vpack.c.bf16 %v758, %v754
      %v763 = vpack.c.bf16 %v759, %v755
      %v764 = vpack.c.bf16 %v760, %v756
      %v765 = vld [vmem:[%s5] sm:$0xf]
      %v766 = vld [vmem:[%s5 + $0x4] sm:$0xf]
      %v767 = vld [vmem:[%s5 + $0x8] sm:$0xf]
      %v768 = vld [vmem:[%s5 + $0xc] sm:$0xf]
      %v769 = vld [vmem:[%s5 + $0x10] sm:$0xf]
      %v770 = vld [vmem:[%s5 + $0x14] sm:$0xf]
      %v771 = vld [vmem:[%s5 + $0x18] sm:$0xf]
      %v772 = vld [vmem:[%s5 + $0x1c] sm:$0xf]
      %v773 = vld [vmem:[%s5 + $0x20] sm:$0xf]
      %v774 = vld [vmem:[%s5 + $0x24] sm:$0xf]
      %v775 = vld [vmem:[%s5 + $0x28] sm:$0xf]
      %v776 = vld [vmem:[%s5 + $0x2c] sm:$0xf]
      %v777 = vld [vmem:[%s5 + $0x30] sm:$0xf]
      %v778 = vld [vmem:[%s5 + $0x34] sm:$0xf]
      %v779 = vld [vmem:[%s5 + $0x38] sm:$0xf]
      %v780 = vld [vmem:[%s5 + $0x3c] sm:$0xf]
      %v781 = vld [vmem:[%s5 + $0x40] sm:$0xf]
      %v782 = vld [vmem:[%s5 + $0x44] sm:$0xf]
      %v783 = vld [vmem:[%s5 + $0x48] sm:$0xf]
      %v784 = vld [vmem:[%s5 + $0x4c] sm:$0xf]
      %v785 = vld [vmem:[%s5 + $0x50] sm:$0xf]
      %v786 = vld [vmem:[%s5 + $0x54] sm:$0xf]
      %v787 = vld [vmem:[%s5 + $0x58] sm:$0xf]
      %v788 = vld [vmem:[%s5 + $0x5c] sm:$0xf]
      %v789 = vld [vmem:[%s5 + $0x60] sm:$0xf]
      %v790 = vld [vmem:[%s5 + $0x64] sm:$0xf]
      %v791 = vld [vmem:[%s5 + $0x68] sm:$0xf]
      %v792 = vld [vmem:[%s5 + $0x6c] sm:$0xf]
      %v793 = vld [vmem:[%s5 + $0x70] sm:$0xf]
      %v794 = vld [vmem:[%s5 + $0x74] sm:$0xf]
      %v795 = vld [vmem:[%s5 + $0x78] sm:$0xf]
      %v796 = vld [vmem:[%s5 + $0x7c] sm:$0xf]
      %v797 = vld [vmem:[%s5 + $0x80] sm:$0xf]
      %v798 = vld [vmem:[%s5 + $0x84] sm:$0xf]
      %v799 = vld [vmem:[%s5 + $0x88] sm:$0xf]
      %v800 = vld [vmem:[%s5 + $0x8c] sm:$0xf]
      %v801 = vld [vmem:[%s5 + $0x90] sm:$0xf]
      %v802 = vld [vmem:[%s5 + $0x94] sm:$0xf]
      %v803 = vld [vmem:[%s5 + $0x98] sm:$0xf]
      %v804 = vld [vmem:[%s5 + $0x9c] sm:$0xf]
      %v805 = vld [vmem:[%s5 + $0xa0] sm:$0xf]
      %v806 = vld [vmem:[%s5 + $0xa4] sm:$0xf]
      %v807 = vld [vmem:[%s5 + $0xa8] sm:$0xf]
      %v808 = vld [vmem:[%s5 + $0xac] sm:$0xf]
      %v809 = vld [vmem:[%s5 + $0xb0] sm:$0xf]
      %v810 = vld [vmem:[%s5 + $0xb4] sm:$0xf]
      %v811 = vld [vmem:[%s5 + $0xb8] sm:$0xf]
      %v812 = vld [vmem:[%s5 + $0xbc] sm:$0xf]
      %v813 = vld [vmem:[%s5 + $0xc0] sm:$0xf]
      %v814 = vld [vmem:[%s5 + $0xc4] sm:$0xf]
      %v815 = vld [vmem:[%s5 + $0xc8] sm:$0xf]
      %v816 = vld [vmem:[%s5 + $0xcc] sm:$0xf]
      %v817 = vld [vmem:[%s5 + $0xd0] sm:$0xf]
      %v818 = vld [vmem:[%s5 + $0xd4] sm:$0xf]
      %v819 = vld [vmem:[%s5 + $0xd8] sm:$0xf]
      %v820 = vld [vmem:[%s5 + $0xdc] sm:$0xf]
      %v821 = vld [vmem:[%s5 + $0xe0] sm:$0xf]
      %v822 = vld [vmem:[%s5 + $0xe4] sm:$0xf]
      %v823 = vld [vmem:[%s5 + $0xe8] sm:$0xf]
      %v824 = vld [vmem:[%s5 + $0xec] sm:$0xf]
      %v825 = vld [vmem:[%s5 + $0xf0] sm:$0xf]
      %v826 = vld [vmem:[%s5 + $0xf4] sm:$0xf]
      %v827 = vld [vmem:[%s5 + $0xf8] sm:$0xf]
      %v828 = vld [vmem:[%s5 + $0xfc] sm:$0xf]
      %s829 = sld [smem:[#allocation2]]
      %v830 = vstv %s829
      %v895 = vunpack.c.l.b16 %v765
      %v896 = vunpack.c.l.b16 %v766
      %v897 = vunpack.c.l.b16 %v767
      %v898 = vunpack.c.l.b16 %v768
      %v899 = vunpack.c.l.b16 %v769
      %v900 = vunpack.c.l.b16 %v770
      %v901 = vunpack.c.l.b16 %v771
      %v902 = vunpack.c.l.b16 %v772
      %v903 = vunpack.c.l.b16 %v773
      %v904 = vunpack.c.l.b16 %v774
      %v905 = vunpack.c.l.b16 %v775
      %v906 = vunpack.c.l.b16 %v776
      %v907 = vunpack.c.l.b16 %v777
      %v908 = vunpack.c.l.b16 %v778
      %v909 = vunpack.c.l.b16 %v779
      %v910 = vunpack.c.l.b16 %v780
      %v911 = vunpack.c.l.b16 %v781
      %v912 = vunpack.c.l.b16 %v782
      %v913 = vunpack.c.l.b16 %v783
      %v914 = vunpack.c.l.b16 %v784
      %v915 = vunpack.c.l.b16 %v785
      %v916 = vunpack.c.l.b16 %v786
      %v917 = vunpack.c.l.b16 %v787
      %v918 = vunpack.c.l.b16 %v788
      %v919 = vunpack.c.l.b16 %v789
      %v920 = vunpack.c.l.b16 %v790
      %v921 = vunpack.c.l.b16 %v791
      %v922 = vunpack.c.l.b16 %v792
      %v923 = vunpack.c.l.b16 %v793
      %v924 = vunpack.c.l.b16 %v794
      %v925 = vunpack.c.l.b16 %v795
      %v926 = vunpack.c.l.b16 %v796
      %v927 = vunpack.c.l.b16 %v797
      %v928 = vunpack.c.l.b16 %v798
      %v929 = vunpack.c.l.b16 %v799
      %v930 = vunpack.c.l.b16 %v800
      %v931 = vunpack.c.l.b16 %v801
      %v932 = vunpack.c.l.b16 %v802
      %v933 = vunpack.c.l.b16 %v803
      %v934 = vunpack.c.l.b16 %v804
      %v935 = vunpack.c.l.b16 %v805
      %v936 = vunpack.c.l.b16 %v806
      %v937 = vunpack.c.l.b16 %v807
      %v938 = vunpack.c.l.b16 %v808
      %v939 = vunpack.c.l.b16 %v809
      %v940 = vunpack.c.l.b16 %v810
      %v941 = vunpack.c.l.b16 %v811
      %v942 = vunpack.c.l.b16 %v812
      %v943 = vunpack.c.l.b16 %v813
      %v944 = vunpack.c.l.b16 %v814
      %v945 = vunpack.c.l.b16 %v815
      %v946 = vunpack.c.l.b16 %v816
      %v947 = vunpack.c.l.b16 %v817
      %v948 = vunpack.c.l.b16 %v818
      %v949 = vunpack.c.l.b16 %v819
      %v950 = vunpack.c.l.b16 %v820
      %v951 = vunpack.c.l.b16 %v821
      %v952 = vunpack.c.l.b16 %v822
      %v953 = vunpack.c.l.b16 %v823
      %v954 = vunpack.c.l.b16 %v824
      %v955 = vunpack.c.l.b16 %v825
      %v956 = vunpack.c.l.b16 %v826
      %v957 = vunpack.c.l.b16 %v827
      %v958 = vunpack.c.l.b16 %v828
      %v959 = vpack.c.b16 %v896, %v895
      %v960 = vpack.c.b16 %v898, %v897
      %v961 = vpack.c.b16 %v900, %v899
      %v962 = vpack.c.b16 %v902, %v901
      %v963 = vpack.c.b16 %v904, %v903
      %v964 = vpack.c.b16 %v906, %v905
      %v965 = vpack.c.b16 %v908, %v907
      %v966 = vpack.c.b16 %v910, %v909
      %v967 = vpack.c.b16 %v912, %v911
      %v968 = vpack.c.b16 %v914, %v913
      %v969 = vpack.c.b16 %v916, %v915
      %v970 = vpack.c.b16 %v918, %v917
      %v971 = vpack.c.b16 %v920, %v919
      %v972 = vpack.c.b16 %v922, %v921
      %v973 = vpack.c.b16 %v924, %v923
      %v974 = vpack.c.b16 %v926, %v925
      %v975 = vpack.c.b16 %v928, %v927
      %v976 = vpack.c.b16 %v930, %v929
      %v977 = vpack.c.b16 %v932, %v931
      %v978 = vpack.c.b16 %v934, %v933
      %v979 = vpack.c.b16 %v936, %v935
      %v980 = vpack.c.b16 %v938, %v937
      %v981 = vpack.c.b16 %v940, %v939
      %v982 = vpack.c.b16 %v942, %v941
      %v983 = vpack.c.b16 %v944, %v943
      %v984 = vpack.c.b16 %v946, %v945
      %v985 = vpack.c.b16 %v948, %v947
      %v986 = vpack.c.b16 %v950, %v949
      %v987 = vpack.c.b16 %v952, %v951
      %v988 = vpack.c.b16 %v954, %v953
      %v989 = vpack.c.b16 %v956, %v955
      %v990 = vpack.c.b16 %v958, %v957
      %1023 = vmatprep.subr.bf16.mxu0 0
      %1024 = vmatpush1.bf16.msra.mxu0 %v959
      %1025 = vmatprep.subr.bf16.mxu0 0
      %1026 = vmatpush1.bf16.msra.mxu0 %v960
      %1027 = vmatprep.subr.bf16.mxu0 0
      %1028 = vmatpush1.bf16.msra.mxu0 %v961
      %1029 = vmatprep.subr.bf16.mxu0 0
      %1030 = vmatpush1.bf16.msra.mxu0 %v962
      %1031 = vmatprep.subr.bf16.mxu0 0
      %1032 = vmatpush1.bf16.msra.mxu0 %v963
      %1033 = vmatprep.subr.bf16.mxu0 0
      %1034 = vmatpush1.bf16.msra.mxu0 %v964
      %1035 = vmatprep.subr.bf16.mxu0 0
      %1036 = vmatpush1.bf16.msra.mxu0 %v965
      %1037 = vmatprep.subr.bf16.mxu0 0
      %1038 = vmatpush1.bf16.msra.mxu0 %v966
      %1039 = vmatprep.subr.bf16.mxu0 0
      %1040 = vmatpush1.bf16.msra.mxu0 %v967
      %1041 = vmatprep.subr.bf16.mxu0 0
      %1042 = vmatpush1.bf16.msra.mxu0 %v968
      %1043 = vmatprep.subr.bf16.mxu0 0
      %1044 = vmatpush1.bf16.msra.mxu0 %v969
      %1045 = vmatprep.subr.bf16.mxu0 0
      %1046 = vmatpush1.bf16.msra.mxu0 %v970
      %1047 = vmatprep.subr.bf16.mxu0 0
      %1048 = vmatpush1.bf16.msra.mxu0 %v971
      %1049 = vmatprep.subr.bf16.mxu0 0
      %1050 = vmatpush1.bf16.msra.mxu0 %v972
      %1051 = vmatprep.subr.bf16.mxu0 0
      %1052 = vmatpush1.bf16.msra.mxu0 %v973
      %1053 = vmatprep.subr.bf16.mxu0 0
      %1054 = vmatpush1.bf16.msra.mxu0 %v974
      %1055 = vmatprep.mubr.bf16.mxu0 %v762
      %1056 = vmatmul.mubr.bf16.gmra.mrb[0].mxu0 %v761
      %v1057 = vpop.f32.mrb[0].mxu0
      %v1058 = vadd.f32 %v830, %v1057
      %v1059 = vpop.f32.mrb[0].mxu0
      %v1060 = vpop.f32.mrb[0].mxu0
      %v1061 = vadd.f32 %v830, %v1060
      %v1062 = vpop.f32.mrb[0].mxu0
      %1063 = vdwg.mxu0
      %1064 = vmatprep.subr.bf16.mxu0 0
      %1065 = vmatpush1.bf16.msra.mxu0 %v975
      %1066 = vmatprep.subr.bf16.mxu0 0
      %1067 = vmatpush1.bf16.msra.mxu0 %v976
      %1068 = vmatprep.subr.bf16.mxu0 0
      %1069 = vmatpush1.bf16.msra.mxu0 %v977
      %1070 = vmatprep.subr.bf16.mxu0 0
      %1071 = vmatpush1.bf16.msra.mxu0 %v978
      %1072 = vmatprep.subr.bf16.mxu0 0
      %1073 = vmatpush1.bf16.msra.mxu0 %v979
      %1074 = vmatprep.subr.bf16.mxu0 0
      %1075 = vmatpush1.bf16.msra.mxu0 %v980
      %1076 = vmatprep.subr.bf16.mxu0 0
      %1077 = vmatpush1.bf16.msra.mxu0 %v981
      %1078 = vmatprep.subr.bf16.mxu0 0
      %1079 = vmatpush1.bf16.msra.mxu0 %v982
      %1080 = vmatprep.subr.bf16.mxu0 0
      %1081 = vmatpush1.bf16.msra.mxu0 %v983
      %1082 = vmatprep.subr.bf16.mxu0 0
      %1083 = vmatpush1.bf16.msra.mxu0 %v984
      %1084 = vmatprep.subr.bf16.mxu0 0
      %1085 = vmatpush1.bf16.msra.mxu0 %v985
      %1086 = vmatprep.subr.bf16.mxu0 0
      %1087 = vmatpush1.bf16.msra.mxu0 %v986
      %1088 = vmatprep.subr.bf16.mxu0 0
      %1089 = vmatpush1.bf16.msra.mxu0 %v987
      %1090 = vmatprep.subr.bf16.mxu0 0
      %1091 = vmatpush1.bf16.msra.mxu0 %v988
      %1092 = vmatprep.subr.bf16.mxu0 0
      %1093 = vmatpush1.bf16.msra.mxu0 %v989
      %1094 = vmatprep.subr.bf16.mxu0 0
      %1095 = vmatpush1.bf16.msra.mxu0 %v990
      %1096 = vmatprep.mubr.bf16.mxu0 %v764
      %1097 = vmatmul.mubr.bf16.gmra.mrb[0].mxu0 %v763
      %v1098 = vpop.f32.mrb[0].mxu0
      %v1099 = vadd.f32 %v1058, %v1098
      %v1100 = vpop.f32.mrb[0].mxu0
      %v1101 = vpop.f32.mrb[0].mxu0
      %v1102 = vadd.f32 %v1061, %v1101
      %v1103 = vpop.f32.mrb[0].mxu0
      %1104 = vdwg.mxu0
      %vm1105 = vcmp.gt.f32.partialorder %v1099, 0.0
      %vm1106 = vcmp.gt.f32.partialorder %v1102, 0.0
      %v1107 = vmul.f32 %v1099, 0.01
      %v1108 = vmul.f32 %v1102, 0.01
      %v1109 = vsel %vm1105, %v1099, %v1107
      %v1110 = vsel %vm1106, %v1102, %v1108
      %v1111 = vpack.c.bf16 %v1110, %v1109
      %v1112 = vld [vmem:[%s6] sm:$0xf]
      %v1113 = vld [vmem:[%s6 + $0x4] sm:$0xf]
      %v1116 = vunpack.c.l.b16 %v1112
      %v1117 = vunpack.c.l.b16 %v1113
      %v1118 = vpack.c.b16 %v1117, %v1116
      %v1121 = vsel %vm386, %v1111, 0
      %1123 = vmatprep.subr.bf16.mxu0 0
      %1124 = vmatpush1.bf16.msra.mxu0 %v1118
      %1125 = vmatprep.subr.bf16.mxu0 0
      %1126 = vmatpush1.bf16.msra.mxu0 0
      %1127 = vmatprep.subr.bf16.mxu0 0
      %1128 = vmatpush1.bf16.msra.mxu0 0
      %1129 = vmatprep.subr.bf16.mxu0 0
      %1130 = vmatpush1.bf16.msra.mxu0 0
      %1131 = vmatprep.subr.bf16.mxu0 0
      %1132 = vmatpush1.bf16.msra.mxu0 0
      %1133 = vmatprep.subr.bf16.mxu0 0
      %1134 = vmatpush1.bf16.msra.mxu0 0
      %1135 = vmatprep.subr.bf16.mxu0 0
      %1136 = vmatpush1.bf16.msra.mxu0 0
      %1137 = vmatprep.subr.bf16.mxu0 0
      %1138 = vmatpush1.bf16.msra.mxu0 0
      %1139 = vmatprep.subr.bf16.mxu0 0
      %1140 = vmatpush1.bf16.msra.mxu0 0
      %1141 = vmatprep.subr.bf16.mxu0 0
      %1142 = vmatpush1.bf16.msra.mxu0 0
      %1143 = vmatprep.subr.bf16.mxu0 0
      %1144 = vmatpush1.bf16.msra.mxu0 0
      %1145 = vmatprep.subr.bf16.mxu0 0
      %1146 = vmatpush1.bf16.msra.mxu0 0
      %1147 = vmatprep.subr.bf16.mxu0 0
      %1148 = vmatpush1.bf16.msra.mxu0 0
      %1149 = vmatprep.subr.bf16.mxu0 0
      %1150 = vmatpush1.bf16.msra.mxu0 0
      %1151 = vmatprep.subr.bf16.mxu0 0
      %1152 = vmatpush1.bf16.msra.mxu0 0
      %1153 = vmatprep.subr.bf16.mxu0 0
      %1154 = vmatpush1.bf16.msra.mxu0 0
      %1155 = vmatprep.mubr.bf16.mxu0 0
      %1156 = vmatmul.mubr.bf16.gmra.mrb[0].mxu0 %v1121
      %v1157 = vpop.f32.mrb[0].mxu0
      %v1158 = vadd.f32 0.0, %v1157
      %v1159 = vpop.f32.mrb[0].mxu0
      %v1160 = vpop.f32.mrb[0].mxu0
      %v1161 = vadd.f32 0.0, %v1160
      %v1162 = vpop.f32.mrb[0].mxu0
      %1163 = vdwg.mxu0
      %v1164 = vpack.c.bf16 %v1161, %v1158
      %v1165 = vld [vmem:[%s7] sm:$0xf]
      %v1166 = vld [vmem:[%s7 + $0x4] sm:$0xf]
      %v1167 = vld [vmem:[%s7 + $0x8] sm:$0xf]
      %v1168 = vld [vmem:[%s7 + $0xc] sm:$0xf]
      %v1173 = vunpack.c.l.b16 %v1165
      %v1174 = vunpack.c.l.b16 %v1166
      %v1175 = vunpack.c.l.b16 %v1167
      %v1176 = vunpack.c.l.b16 %v1168
      %v1177 = vpack.c.b16 %v1174, %v1173
      %v1178 = vpack.c.b16 %v1176, %v1175
      %v1180 = vsel %vm386, %v1177, 0
      %v1183 = vsel %vm386, %v1178, 0
      %1185 = vmatprep.subr.bf16.mxu0 0
      %1186 = vmatpush1.bf16.msra.mxu0 %v1164
      %1187 = vmatprep.subr.bf16.mxu0 0
      %1188 = vmatpush1.bf16.msra.mxu0 0
      %1189 = vmatprep.subr.bf16.mxu0 0
      %1190 = vmatpush1.bf16.msra.mxu0 0
      %1191 = vmatprep.subr.bf16.mxu0 0
      %1192 = vmatpush1.bf16.msra.mxu0 0
      %1193 = vmatprep.subr.bf16.mxu0 0
      %1194 = vmatpush1.bf16.msra.mxu0 0
      %1195 = vmatprep.subr.bf16.mxu0 0
      %1196 = vmatpush1.bf16.msra.mxu0 0
      %1197 = vmatprep.subr.bf16.mxu0 0
      %1198 = vmatpush1.bf16.msra.mxu0 0
      %1199 = vmatprep.subr.bf16.mxu0 0
      %1200 = vmatpush1.bf16.msra.mxu0 0
      %1201 = vmatprep.subr.bf16.mxu0 0
      %1202 = vmatpush1.bf16.msra.mxu0 0
      %1203 = vmatprep.subr.bf16.mxu0 0
      %1204 = vmatpush1.bf16.msra.mxu0 0
      %1205 = vmatprep.subr.bf16.mxu0 0
      %1206 = vmatpush1.bf16.msra.mxu0 0
      %1207 = vmatprep.subr.bf16.mxu0 0
      %1208 = vmatpush1.bf16.msra.mxu0 0
      %1209 = vmatprep.subr.bf16.mxu0 0
      %1210 = vmatpush1.bf16.msra.mxu0 0
      %1211 = vmatprep.subr.bf16.mxu0 0
      %1212 = vmatpush1.bf16.msra.mxu0 0
      %1213 = vmatprep.subr.bf16.mxu0 0
      %1214 = vmatpush1.bf16.msra.mxu0 0
      %1215 = vmatprep.subr.bf16.mxu0 0
      %1216 = vmatpush1.bf16.msra.mxu0 0
      %1217 = vmatprep.mubr.bf16.mxu0 0
      %1218 = vmatmul.mubr.bf16.gmra.mrb[0].mxu0 %v1180
      %v1219 = vpop.f32.mrb[0].mxu0
      %v1220 = vadd.f32 0.0, %v1219
      %v1221 = vpop.f32.mrb[0].mxu0
      %v1222 = vpop.f32.mrb[0].mxu0
      %v1223 = vadd.f32 0.0, %v1222
      %v1224 = vpop.f32.mrb[0].mxu0
      %1225 = vmatprep.mubr.bf16.mxu0 0
      %1226 = vmatmul.mubr.bf16.gmra.mrb[0].mxu0 %v1183
      %v1227 = vpop.f32.mrb[0].mxu0
      %v1228 = vadd.f32 0.0, %v1227
      %v1229 = vpop.f32.mrb[0].mxu0
      %v1230 = vpop.f32.mrb[0].mxu0
      %v1231 = vadd.f32 0.0, %v1230
      %v1232 = vpop.f32.mrb[0].mxu0
      %1233 = vdwg.mxu0
      %vm1234 = vcmask 261120
      %1235 = vst.msk [vmem:[%s335] sm:$0xff] %vm1234, %v1220
      %1236 = vst.msk [vmem:[%s335 + $0x8] sm:$0xff] %vm1234, %v1223
      %1237 = vst.msk [vmem:[%s335 + $0x10] sm:$0xff] %vm1234, %v1228
      %1238 = vst.msk [vmem:[%s335 + $0x18] sm:$0xff] %vm1234, %v1231
      %s1239 = smul.u32 4, %s21
      %p1240 = scmp.lt.s32.totalorder %s1239, 7
      %s1241 = scalar_select %p1240, %s1239, 7
      %s1242 = smul.addr %s1241, 8
      %s1243 = scalar_lea.vmem %s9, %s1242
      // Predicated region
      $region57: #{tpu_custom_call.1} parent=55 // pred_check
        %p1244 = pneg %p233
      $region58: #{tpu_custom_call.1} parent=55 // pred_check_branch
        %1246 = sbr.rel (%p1244) target = $region60
      $region59: #{tpu_custom_call.1} parent=55 // pred_region
        %s1247 = smul.u32 4, %s21
      $region60: #{tpu_custom_call.1} parent=55 // pred_fallthru
        _
    $region56: #{tpu_custom_call.1} parent=5 // pred_fallthru
      _
    %p1248 = scmp.le.s32.totalorder 2, %s16
    // Predicated region
    $region61: #{tpu_custom_call.1} parent=5 // pred_check
      %p1249 = pneg %p1248
    $region62: #{tpu_custom_call.1} parent=5 // pred_check_branch
      %1251 = sbr.rel (%p1249) target = $region64
    $region63: #{tpu_custom_call.1} parent=5 // pred_region
      %s1252 = ssub.s32 %s16, 2
      // Predicated region
      $region65: #{tpu_custom_call.1} parent=63 // pred_check
        %p1253 = pneg %p239
      $region66: #{tpu_custom_call.1} parent=63 // pred_check_branch
        %1255 = sbr.rel (%p1253) target = $region68
      $region67: #{tpu_custom_call.1} parent=63 // pred_region
        %s1256 = smul.u32 4, %s22
        %p1257 = scmp.lt.s32.totalorder %s1256, 7
        %s1258 = scalar_select %p1257, %s1256, 7
        %s1259 = smul.addr %s1258, 8
        %s1260 = scalar_lea.vmem %s9, %s1259
      $region68: #{tpu_custom_call.1} parent=63 // pred_fallthru
        _
    $region64: #{tpu_custom_call.1} parent=5 // pred_fallthru
      _
  $region6: #{tpu_custom_call.1} parent=0 // loop_footer
    %s20 = sadd.s32 1, %s16
  $region7: #{tpu_custom_call.1} parent=0 // loop_footer_branch
    %15 = sbr.rel target = $region3
  $region8: #{tpu_custom_call.1} parent=0 // loop_exit
    _

</llo_original>
